<compile_context>
chip_gen: v5e
topology: v5e:2x2
jax: 0.10.0
libtpu: 0.0.40
codegen_flags: <defaults>
</compile_context>

<pallas_src>
import jax
import jax.numpy as jnp
from jax import lax
from jax.experimental import pallas as pl
from jax.experimental.pallas import tpu as pltpu


_LANE = 128
_SUBLANE = 8


def _round_up(x, m):
    return (x + m - 1) // m * m


def part_encoder_kernel(idx_ref, wf_ref, b_ref, out_ref):
    # idx_ref: [TG, 2R] int32 — fused one-hot column ids (pre-offset wrapper-side)
    # wf_ref:  [K, W]   f32   — block-diagonal folded weight (K = R*2V, W = R*H)
    # b_ref:   [1, W]   f32   — bias tiled R times
    # out_ref: [TG, W]  f32   — R logical H-wide rows packed per physical row
    tg = idx_ref.shape[0]
    k = wf_ref.shape[0]

    idx = idx_ref[...]                                        # [TG, 2R]
    lane = lax.broadcasted_iota(jnp.int32, (tg, k), 1)        # [TG, K]
    # One-hot over the fused K axis: each logical row contributes exactly two
    # hits (affordance col, material col) in disjoint column ranges, so OR of
    # the compares is exactly the {0,1} one-hot sum.
    hit = lane == idx[:, 0:1]
    for j in range(1, idx_ref.shape[1]):                      # static 2R-1 compares
        hit = hit | (lane == idx[:, j:j + 1])
    one_hot = hit.astype(wf_ref.dtype)                        # [TG, K]

    y = jnp.dot(one_hot, wf_ref[...], preferred_element_type=jnp.float32)
    out_ref[...] = jnp.maximum(y + b_ref[...], 0.0)           # ReLU


def part_encoder(parts, emb_table, weight, bias, *, max_rows_per_tile=2048):
    """PartEncoder forward.

    parts:     [B, P, 2] int32 (col 0 = affordance idx, col 1 = material idx)
    emb_table: [V, E]    f32   affordance embedding table (row 0 = padding row)
    weight:    [H, 2E]   f32   nn.Linear weight (PyTorch layout)
    bias:      [H]       f32
    returns    [B, P, H] f32
    """
    B, P, two = parts.shape
    assert two == 2
    V, E = emb_table.shape
    H, in_dim = weight.shape
    assert in_dim == 2 * E

    f32 = jnp.float32
    hi = lax.Precision.HIGHEST

    # ---- fold the (shared) embedding table into the linear weight -----------
    #   concat(emb[a], emb[m]) @ W.T == emb[a] @ W.T[:E] + emb[m] @ W.T[E:]
    w_t = weight.astype(f32).T                                          # [2E, H]
    wf = jnp.concatenate(
        [jnp.dot(emb_table.astype(f32), w_t[:E], precision=hi),
         jnp.dot(emb_table.astype(f32), w_t[E:], precision=hi)], axis=0)  # [2V, H]

    # ---- lane packing: R logical rows per physical output row ---------------
    if H <= _LANE and _LANE % H == 0:
        R = _LANE // H                       # e.g. H=32 -> R=4 -> 128 lanes
    else:
        R = 1                                # fallback: H-wide output directly
    out_w = R * H
    K = R * 2 * V
    wf_blk = jnp.kron(jnp.eye(R, dtype=f32), wf)                        # [K, out_w]
    bias_blk = jnp.tile(bias.astype(f32), R).reshape(1, out_w)

    # ---- row tiling over packed rows -----------------------------------------
    N = B * P
    Ng = -(-N // R)                                   # packed rows needed
    max_tg = max(_SUBLANE, _round_up(max_rows_per_tile // R, _SUBLANE))
    min_split_tg = max(_SUBLANE, 256 // R)            # ~256 logical rows

    if Ng <= max_tg and Ng < 2 * min_split_tg:
        tg, Ngp = Ng, Ng                              # single full-array block
    else:
        # >= 2 sublane-aligned "parallel" tiles so both v7x TensorCores work.
        tg = min(max_tg, _round_up(-(-Ng // 2), _SUBLANE))
        Ngp = _round_up(Ng, tg)
    grid = Ngp // tg

    # ---- fused one-hot column ids, precomputed wrapper-side ------------------
    Nl = Ngp * R
    idx2 = parts.reshape(N, 2).astype(jnp.int32)
    if Nl != N:
        # Padded rows point at embedding row 0 (zeroed padding row); their
        # ReLU(bias) junk is sliced off below.
        idx2 = jnp.pad(idx2, ((0, Nl - N), (0, 0)))
    seg = (jnp.arange(Nl, dtype=jnp.int32) % R) * (2 * V)
    idx_fused = jnp.stack(
        [idx2[:, 0] + seg, idx2[:, 1] + V + seg], axis=-1).reshape(Ngp, 2 * R)

    cost = pl.CostEstimate(
        flops=2 * Ngp * K * out_w,
        transcendentals=0,
        bytes_accessed=4 * (Ngp * 2 * R + K * out_w + out_w + Ngp * out_w))

    out_packed = pl.pallas_call(
        part_encoder_kernel,
        out_shape=jax.ShapeDtypeStruct((Ngp, out_w), f32),
        grid_spec=pltpu.PrefetchScalarGridSpec(
            num_scalar_prefetch=0,
            grid=(grid,),
            in_specs=[
                pl.BlockSpec((tg, 2 * R), lambda i: (i, 0)),
                # Grid-invariant operands: same block (0, 0) every step, so the
                # VMEM buffers are reused without re-issuing DMA.
                pl.BlockSpec((K, out_w), lambda i: (0, 0)),
                pl.BlockSpec((1, out_w), lambda i: (0, 0)),
            ],
            out_specs=pl.BlockSpec((tg, out_w), lambda i: (i, 0)),
        ),
        compiler_params=pltpu.CompilerParams(
            dimension_semantics=("parallel",),
            vmem_limit_bytes=32 * 1024 * 1024),
        cost_estimate=cost,
    )(idx_fused, wf_blk, bias_blk)

    # (Ngp, R*H) row-major is bit-identical memory to (Ngp*R, H): reshape is free.
    out = out_packed.reshape(Nl, H)
    if Nl != N:
        out = out[:N]                # tiny tail-only copy; absent when R | N
    return out.reshape(B, P, H)


def reference(parts, emb_table, weight, bias):
    aff = jnp.take(emb_table, parts[:, :, 0], axis=0)
    mat = jnp.take(emb_table, parts[:, :, 1], axis=0)  # same table — faithful to the PyTorch code
    x = jnp.concatenate([aff, mat], axis=-1)
    y = jnp.dot(x, weight.T, precision=lax.Precision.HIGHEST) + bias
    return jnp.maximum(y, 0.0)


if __name__ == "__main__":
    # Module hyperparameters (small, but consistent with the forward pass).
    affordance_vocab_size = 16
    material_vocab_size = 16            # material table exists but is unused by the forward
    affordance_embedding_dim = 16
    material_embedding_dim = 16         # must equal affordance dim for the original forward
    part_encoder_dim = 32

    B, P = 2, 8

    key = jax.random.PRNGKey(0)
    k_emb, k_w, k_b, k_parts = jax.random.split(key, 4)

    # nn.Embedding ~ N(0,1); padding_idx=0 row zeroed.
    emb_table = jax.random.normal(
        k_emb, (affordance_vocab_size, affordance_embedding_dim), dtype=jnp.float32)
    emb_table = emb_table.at[0].set(0.0)

    in_dim = affordance_embedding_dim + material_embedding_dim
    bound = in_dim ** -0.5
    weight = jax.random.uniform(
        k_w, (part_encoder_dim, in_dim), minval=-bound, maxval=bound, dtype=jnp.float32)
    bias = jax.random.uniform(
        k_b, (part_encoder_dim,), minval=-bound, maxval=bound, dtype=jnp.float32)

    # Both columns are looked up in the affordance table (faithful to PyTorch),
    # so indices stay within its vocab.
    parts = jax.random.randint(
        k_parts, (B, P, 2), minval=0, maxval=affordance_vocab_size, dtype=jnp.int32)

    out = jax.block_until_ready(part_encoder(parts, emb_table, weight, bias))
    ref = reference(parts, emb_table, weight, bias)

    assert out.shape == (B, P, part_encoder_dim)
    max_err = float(jnp.max(jnp.abs(out - ref)))
    assert jnp.allclose(out, ref, atol=2e-4, rtol=2e-4), max_err

    print("KERNEL_OK")
</pallas_src>

<mosaic_0001>
module attributes {stable_mosaic.version = 11 : i64} {
  func.func @part_encoder_kernel(%arg0: i32, %arg1: memref<4x8xi32, #tpu.memory_space<vmem>>, %arg2: memref<128x128xf32, #tpu.memory_space<vmem>>, %arg3: memref<1x128xf32, #tpu.memory_space<vmem>>, %arg4: memref<4x128xf32, #tpu.memory_space<vmem>>) attributes {dimension_semantics = [#tpu.dimension_semantics<parallel>], iteration_bounds = array<i64: 1>, scalar_prefetch = 0 : i64, scratch_operands = 0 : i64, tpu.core_type = #tpu.core_type<tc>, window_params = [{transform_indices = @transform_0, window_bounds = array<i64: 4, 8>}, {pipeline_mode = #tpu.pipeline_mode<synchronous>, transform_indices = @transform_1, window_bounds = array<i64: 128, 128>}, {pipeline_mode = #tpu.pipeline_mode<synchronous>, transform_indices = @transform_2, window_bounds = array<i64: 1, 128>}, {transform_indices = @transform_3, window_bounds = array<i64: 4, 128>}]} {
    %c0 = arith.constant 0 : index
    %c0_0 = arith.constant 0 : index
    %0 = vector.load %arg1[%c0, %c0_0] : memref<4x8xi32, #tpu.memory_space<vmem>>, vector<4x8xi32>
    %1 = tpu.iota {dimensions = array<i32: 1>} : vector<4x128xi32>
    %2 = vector.extract_strided_slice %0 {offsets = [0, 0], sizes = [4, 1], strides = [1, 1]} : vector<4x8xi32> to vector<4x1xi32>
    %3 = vector.broadcast %2 : vector<4x1xi32> to vector<4x128xi32>
    %4 = arith.cmpi eq, %1, %3 : vector<4x128xi32>
    %5 = vector.extract_strided_slice %0 {offsets = [0, 1], sizes = [4, 1], strides = [1, 1]} : vector<4x8xi32> to vector<4x1xi32>
    %6 = vector.broadcast %5 : vector<4x1xi32> to vector<4x128xi32>
    %7 = arith.cmpi eq, %1, %6 : vector<4x128xi32>
    %8 = arith.ori %4, %7 : vector<4x128xi1>
    %9 = vector.extract_strided_slice %0 {offsets = [0, 2], sizes = [4, 1], strides = [1, 1]} : vector<4x8xi32> to vector<4x1xi32>
    %10 = vector.broadcast %9 : vector<4x1xi32> to vector<4x128xi32>
    %11 = arith.cmpi eq, %1, %10 : vector<4x128xi32>
    %12 = arith.ori %8, %11 : vector<4x128xi1>
    %13 = vector.extract_strided_slice %0 {offsets = [0, 3], sizes = [4, 1], strides = [1, 1]} : vector<4x8xi32> to vector<4x1xi32>
    %14 = vector.broadcast %13 : vector<4x1xi32> to vector<4x128xi32>
    %15 = arith.cmpi eq, %1, %14 : vector<4x128xi32>
    %16 = arith.ori %12, %15 : vector<4x128xi1>
    %17 = vector.extract_strided_slice %0 {offsets = [0, 4], sizes = [4, 1], strides = [1, 1]} : vector<4x8xi32> to vector<4x1xi32>
    %18 = vector.broadcast %17 : vector<4x1xi32> to vector<4x128xi32>
    %19 = arith.cmpi eq, %1, %18 : vector<4x128xi32>
    %20 = arith.ori %16, %19 : vector<4x128xi1>
    %21 = vector.extract_strided_slice %0 {offsets = [0, 5], sizes = [4, 1], strides = [1, 1]} : vector<4x8xi32> to vector<4x1xi32>
    %22 = vector.broadcast %21 : vector<4x1xi32> to vector<4x128xi32>
    %23 = arith.cmpi eq, %1, %22 : vector<4x128xi32>
    %24 = arith.ori %20, %23 : vector<4x128xi1>
    %25 = vector.extract_strided_slice %0 {offsets = [0, 6], sizes = [4, 1], strides = [1, 1]} : vector<4x8xi32> to vector<4x1xi32>
    %26 = vector.broadcast %25 : vector<4x1xi32> to vector<4x128xi32>
    %27 = arith.cmpi eq, %1, %26 : vector<4x128xi32>
    %28 = arith.ori %24, %27 : vector<4x128xi1>
    %29 = vector.extract_strided_slice %0 {offsets = [0, 7], sizes = [4, 1], strides = [1, 1]} : vector<4x8xi32> to vector<4x1xi32>
    %30 = vector.broadcast %29 : vector<4x1xi32> to vector<4x128xi32>
    %31 = arith.cmpi eq, %1, %30 : vector<4x128xi32>
    %32 = arith.ori %28, %31 : vector<4x128xi1>
    %33 = arith.extui %32 : vector<4x128xi1> to vector<4x128xi32>
    %34 = arith.sitofp %33 : vector<4x128xi32> to vector<4x128xf32>
    %c0_1 = arith.constant 0 : index
    %c0_2 = arith.constant 0 : index
    %35 = vector.load %arg2[%c0_1, %c0_2] : memref<128x128xf32, #tpu.memory_space<vmem>>, vector<128x128xf32>
    %cst = arith.constant dense<0.000000e+00> : vector<4x128xf32>
    %36 = tpu.matmul %34, %35, %cst {dimension_numbers = #tpu.dot_dimension_numbers<[1], [0], [0], [1], [0, 0, 1, 1], [], []>} : vector<4x128xf32>, vector<128x128xf32>, vector<4x128xf32> -> vector<4x128xf32>
    %c0_3 = arith.constant 0 : index
    %c0_4 = arith.constant 0 : index
    %37 = vector.load %arg3[%c0_3, %c0_4] : memref<1x128xf32, #tpu.memory_space<vmem>>, vector<1x128xf32>
    %38 = vector.broadcast %37 : vector<1x128xf32> to vector<4x128xf32>
    %39 = arith.addf %36, %38 : vector<4x128xf32>
    %cst_5 = arith.constant 0.000000e+00 : f32
    %40 = vector.broadcast %cst_5 : f32 to vector<4x128xf32>
    %41 = arith.maximumf %39, %40 : vector<4x128xf32>
    %c0_6 = arith.constant 0 : index
    %c0_7 = arith.constant 0 : index
    %42 = vector.load %arg4[%c0_6, %c0_7] : memref<4x128xf32, #tpu.memory_space<vmem>>, vector<4x128xf32>
    tpu.vector_store %arg4[%c0_6, %c0_7], %41 {strides = array<i32>} : memref<4x128xf32, #tpu.memory_space<vmem>>, vector<4x128xf32>,
    return
  }
  func.func @transform_0(%arg0: i32) -> (i32, i32) {
    %c0_i32 = arith.constant 0 : i32
    %c0_i32_0 = arith.constant 0 : i32
    return %arg0, %c0_i32 : i32, i32
  }
  func.func @transform_1(%arg0: i32) -> (i32, i32) {
    %c0_i32 = arith.constant 0 : i32
    %c0_i32_0 = arith.constant 0 : i32
    %c0_i32_1 = arith.constant 0 : i32
    return %c0_i32, %c0_i32_0 : i32, i32
  }
  func.func @transform_2(%arg0: i32) -> (i32, i32) {
    %c0_i32 = arith.constant 0 : i32
    %c0_i32_0 = arith.constant 0 : i32
    %c0_i32_1 = arith.constant 0 : i32
    return %c0_i32, %c0_i32_0 : i32, i32
  }
  func.func @transform_3(%arg0: i32) -> (i32, i32) {
    %c0_i32 = arith.constant 0 : i32
    %c0_i32_0 = arith.constant 0 : i32
    return %arg0, %c0_i32 : i32, i32
  }
}

</mosaic_0001>

<llo_original>
// kernel: tpu_custom_call.1
$region0: #{tpu_custom_call.1}
  #allocation0 [shape = 'u32[]', space=smem, size = 0x4, offset = 0x4, fixed_abs, tag = 'smem constant byte address 0x4 - core index']
  #allocation1 [shape = 'u32[72,128]{1,0:T(1,128)}', space=vmem, size = 0x9000, scoped, tag = 'internal scratch']
  %s0 = inlined_call_operand.hbm [shape: s32[4,8], index: 0, kind: input, shape index: {}]
  %s1 = inlined_call_operand.hbm [shape: f32[128,128], index: 1, kind: input, shape index: {}]
  %s2 = inlined_call_operand.vmem [shape: f32[1,128], index: 2, kind: input, shape index: {}]
  %s3 = inlined_call_operand.hbm [shape: f32[4,128], index: 3, kind: output, shape index: {}]
  %s4 = sld [smem:[#allocation0]]
  $region30: #{tpu_custom_call.1} parent=0
    _
  %s6 = ssub.s32 1, %s4
  %s7 = scalar_select 0, %s6, %s4
  $region1: #{tpu_custom_call.1} parent=0
    #allocation2 [shape = 'u8[2048]{0}', space=vmem, size = 0x800, scoped, tag = 'input window, operand 0, single buffered']
    #allocation3 [shape = 's32[1]{0}', space=sflag, size = 0x4, scoped, tag = 'scoped memory for tpu_custom_call.1']
    #allocation4 [shape = 's32[1]{0}', space=sflag, size = 0x4, scoped, tag = 'scoped memory for tpu_custom_call.1']
    #allocation5 [shape = 'u8[65536]{0}', space=vmem, size = 0x10000, scoped, tag = 'input window, operand 1, single buffered']
    #allocation6 [shape = 's32[1]{0}', space=sflag, size = 0x4, scoped, tag = 'scoped memory for tpu_custom_call.1']
    #allocation7 [shape = 'u8[2048]{0}', space=vmem, size = 0x800, scoped, tag = 'output window, operand 0, single buffered']
    %8 = vsyncpa [#allocation3], 0
    %9 = vsyncpa [#allocation6], 0
    %10 = vsyncpa [#allocation4], 0
    // Predicated region
    $region2: #{tpu_custom_call.1} parent=1 // pred_check
      _
    $region3: #{tpu_custom_call.1} parent=1 // pred_check_branch
      %12 = sbr.rel (0) target = $region5
    $region4: #{tpu_custom_call.1} parent=1 // pred_region
      %14 = vsyncadd [#allocation3], 0
      %s16 = sshll.u32 %s0, 4
      %s17 = int_to_ptr.hbm [resolvable:$true] %s16
      %s18 = sshll.u32 [#allocation2], 4
      %s19 = int_to_ptr.vmem [resolvable:$true] %s18
      %21 = dma.hbm_to_vmem [thread:$0]  %s17, 64, %s19, [#allocation3]
    $region5: #{tpu_custom_call.1} parent=1 // pred_fallthru
      _
    // Predicated region
    $region6: #{tpu_custom_call.1} parent=1 // pred_check
      _
    $region7: #{tpu_custom_call.1} parent=1 // pred_check_branch
      %23 = sbr.rel (0) target = $region9
    $region8: #{tpu_custom_call.1} parent=1 // pred_region
      %25 = vsyncadd [#allocation6], 0
      %s26 = sshll.u32 %s1, 4
      %s27 = int_to_ptr.hbm [resolvable:$true] %s26
      %s28 = sshll.u32 [#allocation5], 4
      %s29 = int_to_ptr.vmem [resolvable:$true] %s28
      %34 = dma.hbm_to_vmem [thread:$0]  %s27, 2048, %s29, [#allocation6], 128, 128, 8
    $region9: #{tpu_custom_call.1} parent=1 // pred_fallthru
      _
    // Predicated region
    $region10: #{tpu_custom_call.1} parent=1 // pred_check
      _
    $region11: #{tpu_custom_call.1} parent=1 // pred_check_branch
      %36 = sbr.rel (0) target = $region13
    $region12: #{tpu_custom_call.1} parent=1 // pred_region
      _
    $region13: #{tpu_custom_call.1} parent=1 // pred_fallthru
      _
    // Predicated region
    $region14: #{tpu_custom_call.1} parent=1 // pred_check
      _
    $region15: #{tpu_custom_call.1} parent=1 // pred_check_branch
      %38 = sbr.rel (0) target = $region17
    $region16: #{tpu_custom_call.1} parent=1 // pred_region
      %40 = dma.done [#allocation3], 64
    $region17: #{tpu_custom_call.1} parent=1 // pred_fallthru
      _
    // Predicated region
    $region18: #{tpu_custom_call.1} parent=1 // pred_check
      _
    $region19: #{tpu_custom_call.1} parent=1 // pred_check_branch
      %42 = sbr.rel (0) target = $region21
    $region20: #{tpu_custom_call.1} parent=1 // pred_region
      %44 = dma.done [#allocation6], 2048
    $region21: #{tpu_custom_call.1} parent=1 // pred_fallthru
      _
    %v45 = vld [vmem:[#allocation2] sm:$0xf]
    %v46 = vlaneseq
    %v47 = vand.u32 %v46, 127
    %48 = vset.pattern.permute.xlu0 0
    %49 = vperm.xlu0 %48, %v45
    %v50 = vpop.permute.xlu0 %49
    %vm51 = vcmp.eq.s32.totalorder %v47, %v50
    %52 = vset.pattern.permute.xlu0 1
    %53 = vperm.xlu0 %52, %v45
    %v54 = vpop.permute.xlu0 %53
    %vm55 = vcmp.eq.s32.totalorder %v47, %v54
    %vm56 = vmor %vm51, %vm55
    %57 = vset.pattern.permute.xlu0 2
    %58 = vperm.xlu0 %57, %v45
    %v59 = vpop.permute.xlu0 %58
    %vm60 = vcmp.eq.s32.totalorder %v47, %v59
    %vm61 = vmor %vm56, %vm60
    %62 = vset.pattern.permute.xlu0 3
    %63 = vperm.xlu0 %62, %v45
    %v64 = vpop.permute.xlu0 %63
    %vm65 = vcmp.eq.s32.totalorder %v47, %v64
    %vm66 = vmor %vm61, %vm65
    %67 = vset.pattern.permute.xlu0 4
    %68 = vperm.xlu0 %67, %v45
    %v69 = vpop.permute.xlu0 %68
    %vm70 = vcmp.eq.s32.totalorder %v47, %v69
    %vm71 = vmor %vm66, %vm70
    %72 = vset.pattern.permute.xlu0 5
    %73 = vperm.xlu0 %72, %v45
    %v74 = vpop.permute.xlu0 %73
    %vm75 = vcmp.eq.s32.totalorder %v47, %v74
    %vm76 = vmor %vm71, %vm75
    %77 = vset.pattern.permute.xlu0 6
    %78 = vperm.xlu0 %77, %v45
    %v79 = vpop.permute.xlu0 %78
    %vm80 = vcmp.eq.s32.totalorder %v47, %v79
    %vm81 = vmor %vm76, %vm80
    %82 = vset.pattern.permute.xlu0 7
    %83 = vperm.xlu0 %82, %v45
    %v84 = vpop.permute.xlu0 %83
    %vm85 = vcmp.eq.s32.totalorder %v47, %v84
    %vm86 = vmor %vm81, %vm85
    %v87 = vsel %vm86, 1, 0
    %v88 = vcvt.s32.f32 %v87
    %v89 = vld [vmem:[#allocation5] sm:$0xff]
    %v90 = vld [vmem:[#allocation5 + $0x8] sm:$0xff]
    %v91 = vld [vmem:[#allocation5 + $0x10] sm:$0xff]
    %v92 = vld [vmem:[#allocation5 + $0x18] sm:$0xff]
    %v93 = vld [vmem:[#allocation5 + $0x20] sm:$0xff]
    %v94 = vld [vmem:[#allocation5 + $0x28] sm:$0xff]
    %v95 = vld [vmem:[#allocation5 + $0x30] sm:$0xff]
    %v96 = vld [vmem:[#allocation5 + $0x38] sm:$0xff]
    %v97 = vld [vmem:[#allocation5 + $0x40] sm:$0xff]
    %v98 = vld [vmem:[#allocation5 + $0x48] sm:$0xff]
    %v99 = vld [vmem:[#allocation5 + $0x50] sm:$0xff]
    %v100 = vld [vmem:[#allocation5 + $0x58] sm:$0xff]
    %v101 = vld [vmem:[#allocation5 + $0x60] sm:$0xff]
    %v102 = vld [vmem:[#allocation5 + $0x68] sm:$0xff]
    %v103 = vld [vmem:[#allocation5 + $0x70] sm:$0xff]
    %v104 = vld [vmem:[#allocation5 + $0x78] sm:$0xff]
    %v105 = vld [vmem:[%s2] sm:$0x1]
    %v107 = vperm.slane %v105, 0
    %109 = vmatpush.msra.mxu0 %v104
    %110 = vmatpush.msra.mxu0 %v103
    %111 = vmatpush.msra.mxu0 %v102
    %112 = vmatpush.msra.mxu0 %v101
    %113 = vmatpush.msra.mxu0 %v100
    %114 = vmatpush.msra.mxu0 %v99
    %115 = vmatpush.msra.mxu0 %v98
    %116 = vmatpush.msra.mxu0 %v97
    %117 = vmatpush.msra.mxu0 %v96
    %118 = vmatpush.msra.mxu0 %v95
    %119 = vmatpush.msra.mxu0 %v94
    %120 = vmatpush.msra.mxu0 %v93
    %121 = vmatpush.msra.mxu0 %v92
    %122 = vmatpush.msra.mxu0 %v91
    %123 = vmatpush.msra.mxu0 %v90
    %124 = vmatpush.msra.mxu0 %v89
    %125 = vmatmul.f32.gmra.mxu0 %v88
    %v126 = vpop.f32.mrf.mxu0
    %v127 = vadd.f32 %v107, %v126
    %128 = vdwg.mxu0
    %v129 = vmax.f32 %v127, 0.0
    %130 = vst [vmem:[#allocation7] sm:$0xf] %v129
    // Predicated region
    $region22: #{tpu_custom_call.1} parent=1 // pred_check
      _
    $region23: #{tpu_custom_call.1} parent=1 // pred_check_branch
      %132 = sbr.rel (0) target = $region25
    $region24: #{tpu_custom_call.1} parent=1 // pred_region
      %134 = vsyncadd [#allocation4], 0
      %s136 = sshll.u32 [#allocation7], 4
      %s137 = int_to_ptr.vmem [resolvable:$true] %s136
      %s138 = sshll.u32 %s3, 4
      %s139 = int_to_ptr.hbm [resolvable:$true] %s138
      %141 = dma.vmem_to_hbm [thread:$0]  %s137, 64, %s139, [#allocation4]
    $region25: #{tpu_custom_call.1} parent=1 // pred_fallthru
      _
    // Predicated region
    $region26: #{tpu_custom_call.1} parent=1 // pred_check
      _
    $region27: #{tpu_custom_call.1} parent=1 // pred_check_branch
      %143 = sbr.rel (0) target = $region29
    $region28: #{tpu_custom_call.1} parent=1 // pred_region
      %145 = dma.done [#allocation4], 64
    $region29: #{tpu_custom_call.1} parent=1 // pred_fallthru
      _
    %146 = vsyncpa [#allocation3], 1
    %147 = vsyncpa [#allocation6], 1
    %148 = vsyncpa [#allocation4], 1

</llo_original>
